<compile_context>
chip_gen: v7x
topology: tpu7x:2x2x1
jax: 0.10.0
libtpu: 0.0.40
codegen_flags: <defaults>
</compile_context>

<pallas_src>
import math

import jax
import jax.numpy as jnp
from jax.experimental import pallas as pl
from jax.experimental.pallas import tpu as pltpu

_SQRT_2_OVER_PI = math.sqrt(2.0 / math.pi)
_C2 = _SQRT_2_OVER_PI * 0.044715   # folded at trace time


def _gelu_kernel(x_ref, o_ref):
    x = x_ref[...]
    # Compute in f32 for sub-32-bit dtypes (PyTorch-compatible intermediates;
    # free here since the kernel is memory-bound).
    cdt = jnp.float32 if jnp.dtype(x.dtype).itemsize < 4 else x.dtype
    xf = x.astype(cdt)
    c = jnp.asarray(_SQRT_2_OVER_PI, cdt)
    c2 = jnp.asarray(_C2, cdt)
    half = jnp.asarray(0.5, cdt)
    one = jnp.asarray(1.0, cdt)
    inner = xf * (c + c2 * (xf * xf))       # == c * (x + 0.044715 * x^3)
    y = half * xf * (one + jnp.tanh(inner))  # tanh -> EUP slot
    o_ref[...] = y.astype(o_ref.dtype)


def _gelu_jnp(x):
    """Plain-XLA tanh-GELU for tiny / tail pieces (same math as the kernel)."""
    cdt = jnp.float32 if jnp.dtype(x.dtype).itemsize < 4 else x.dtype
    xf = x.astype(cdt)
    inner = xf * (jnp.asarray(_SQRT_2_OVER_PI, cdt) + jnp.asarray(_C2, cdt) * xf * xf)
    return (jnp.asarray(0.5, cdt) * xf * (jnp.asarray(1.0, cdt) + jnp.tanh(inner))).astype(x.dtype)


def _pick_lane_width(n: int) -> int:
    """Largest lane-dense width (multiple of 128) dividing n. n must be %128==0."""
    for cand in (1024, 512, 256, 128):
        if n % cand == 0:
            return cand
    return 0


def _round_up(a: int, b: int) -> int:
    return ((a + b - 1) // b) * b


def gelu_pallas(x: jax.Array) -> jax.Array:
    """Tanh-approx GELU, matching the PyTorch module's forward."""
    orig_shape = x.shape
    dtype = x.dtype
    n = x.size
    if n == 0:
        return x
    itemsize = jnp.dtype(dtype).itemsize
    x_flat = jnp.reshape(x, (-1,))

    n_main = (n // 128) * 128
    if n_main == 0:
        # < 128 elements: kernel launch overhead dominates; plain XLA.
        return jnp.reshape(_gelu_jnp(x_flat), orig_shape)

    main = x_flat if n_main == n else x_flat[:n_main]
    lane = _pick_lane_width(n_main)                 # >= 128, divides n_main
    rows = n_main // lane
    x2d = jnp.reshape(main, (rows, lane))

    # Native sublane tile per dtype: 8 rows (f32), 16 (bf16/f16), 32 (int8/fp8).
    row_align = max(8, (8 * 4) // itemsize)

    # ~4 MiB per buffer -> in+out double-buffered footprint ~16 MiB.
    target_block_bytes = 4 * 1024 * 1024
    rows_target = max(
        row_align,
        (target_block_bytes // (lane * itemsize) // row_align) * row_align,
    )

    total_bytes = rows * lane * itemsize
    min_steps = 8   # keep both v7x TCs busy and DMA/compute overlapped
    if total_bytes <= 512 * 1024 or rows < row_align:
        block_rows = rows                            # full-extent block (always legal)
    else:
        per_step = _round_up(pl.cdiv(rows, min_steps), row_align)
        block_rows = max(row_align, min(rows_target, per_step))

    grid = (pl.cdiv(rows, block_rows),)              # partial tail block is masked

    # Explicit scoped-VMEM limit so the ~16 MiB pipelined footprint is valid on
    # v5e (16 MiB default) while staying well under v7x's 64 MiB physical VMEM.
    footprint = 4 * block_rows * lane * itemsize     # in+out, double-buffered
    vmem_limit = int(min(max(footprint * 3 // 2, 16 * 1024 * 1024), 32 * 1024 * 1024))

    cost = pl.CostEstimate(
        flops=8 * n_main, transcendentals=n_main, bytes_accessed=2 * n_main * itemsize
    )

    out2d = pl.pallas_call(
        _gelu_kernel,
        out_shape=jax.ShapeDtypeStruct(x2d.shape, dtype),
        grid_spec=pltpu.PrefetchScalarGridSpec(
            num_scalar_prefetch=0,
            grid=grid,
            in_specs=[pl.BlockSpec((block_rows, lane), lambda i: (i, 0))],
            out_specs=pl.BlockSpec((block_rows, lane), lambda i: (i, 0)),
        ),
        compiler_params=pltpu.CompilerParams(
            dimension_semantics=("parallel",),
            vmem_limit_bytes=vmem_limit,
        ),
        cost_estimate=cost,
    )(x2d)

    out_main = jnp.reshape(out2d, (-1,))
    if n_main == n:
        return jnp.reshape(out_main, orig_shape)
    # Ragged tail (<=127 elems): plain XLA, no pad/slice extra HBM passes.
    tail = _gelu_jnp(x_flat[n_main:])
    return jnp.reshape(jnp.concatenate([out_main, tail]), orig_shape)


def gelu_reference(x: jax.Array) -> jax.Array:
    xf = x.astype(jnp.float32)
    c = jnp.sqrt(jnp.asarray(2.0 / jnp.pi, dtype=jnp.float32))
    y = 0.5 * xf * (1.0 + jnp.tanh(c * (xf + 0.044715 * jnp.power(xf, 3))))
    return y.astype(x.dtype)


if __name__ == "__main__":
    key = jax.random.PRNGKey(0)

    # Main case: small NCHW conv-style tensor, matching the module's usage.
    x = jax.random.normal(key, (2, 4, 16, 16), dtype=jnp.float32)
    out = jax.block_until_ready(gelu_pallas(x))
    ref = gelu_reference(x)
    assert out.shape == x.shape and out.dtype == x.dtype
    assert jnp.allclose(out, ref, atol=1e-5, rtol=1e-5), "f32 small mismatch"

    # Medium f32 tensor: exercises the multi-step (>=8) pipelined grid path.
    k1, k2, k3 = jax.random.split(key, 3)
    xm = jax.random.normal(k1, (8, 64, 32, 32), dtype=jnp.float32)
    outm = jax.block_until_ready(gelu_pallas(xm))
    assert jnp.allclose(outm, gelu_reference(xm), atol=1e-5, rtol=1e-5), "f32 medium mismatch"

    # bf16 input: f32 intermediate math inside the kernel.
    xb = jax.random.normal(k2, (4, 8, 16, 16), dtype=jnp.bfloat16)
    outb = jax.block_until_ready(gelu_pallas(xb))
    assert outb.dtype == jnp.bfloat16
    assert jnp.allclose(outb.astype(jnp.float32),
                        gelu_reference(xb).astype(jnp.float32),
                        atol=1e-2, rtol=1e-2), "bf16 mismatch"

    # Ragged size: 128-divisible prefix via the kernel, tail via plain XLA.
    xr = jax.random.normal(k3, (2, 67, 3), dtype=jnp.float32)
    outr = jax.block_until_ready(gelu_pallas(xr))
    assert jnp.allclose(outr, gelu_reference(xr), atol=1e-5, rtol=1e-5), "ragged mismatch"

    print("KERNEL_OK")
</pallas_src>

<mosaic_0001>
module attributes {stable_mosaic.version = 11 : i64} {
  func.func @_gelu_kernel(%arg0: i32, %arg1: memref<2x1024xf32, #tpu.memory_space<vmem>>, %arg2: memref<2x1024xf32, #tpu.memory_space<vmem>>) attributes {dimension_semantics = [#tpu.dimension_semantics<parallel>], iteration_bounds = array<i64: 1>, scalar_prefetch = 0 : i64, scratch_operands = 0 : i64, tpu.core_type = #tpu.core_type<tc>, window_params = [{transform_indices = @transform_0, window_bounds = array<i64: 2, 1024>}, {transform_indices = @transform_1, window_bounds = array<i64: 2, 1024>}]} {
    %c0 = arith.constant 0 : index
    %c0_0 = arith.constant 0 : index
    %0 = vector.load %arg1[%c0, %c0_0] : memref<2x1024xf32, #tpu.memory_space<vmem>>, vector<2x1024xf32>
    %1 = arith.mulf %0, %0 : vector<2x1024xf32>
    %cst = arith.constant 0.0356774069 : f32
    %2 = vector.broadcast %cst : f32 to vector<2x1024xf32>
    %3 = arith.mulf %2, %1 : vector<2x1024xf32>
    %cst_1 = arith.constant 0.797884583 : f32
    %4 = vector.broadcast %cst_1 : f32 to vector<2x1024xf32>
    %5 = arith.addf %4, %3 : vector<2x1024xf32>
    %6 = arith.mulf %0, %5 : vector<2x1024xf32>
    %cst_2 = arith.constant 5.000000e-01 : f32
    %7 = vector.broadcast %cst_2 : f32 to vector<2x1024xf32>
    %8 = arith.mulf %7, %0 : vector<2x1024xf32>
    %9 = math.tanh %6 : vector<2x1024xf32>
    %cst_3 = arith.constant 1.000000e+00 : f32
    %10 = vector.broadcast %cst_3 : f32 to vector<2x1024xf32>
    %11 = arith.addf %10, %9 : vector<2x1024xf32>
    %12 = arith.mulf %8, %11 : vector<2x1024xf32>
    %c0_4 = arith.constant 0 : index
    %c0_5 = arith.constant 0 : index
    %13 = vector.load %arg2[%c0_4, %c0_5] : memref<2x1024xf32, #tpu.memory_space<vmem>>, vector<2x1024xf32>
    tpu.vector_store %arg2[%c0_4, %c0_5], %12 {strides = array<i32>} : memref<2x1024xf32, #tpu.memory_space<vmem>>, vector<2x1024xf32>,
    return
  }
  func.func @transform_0(%arg0: i32) -> (i32, i32) {
    %c0_i32 = arith.constant 0 : i32
    %c0_i32_0 = arith.constant 0 : i32
    return %arg0, %c0_i32 : i32, i32
  }
  func.func @transform_1(%arg0: i32) -> (i32, i32) {
    %c0_i32 = arith.constant 0 : i32
    %c0_i32_0 = arith.constant 0 : i32
    return %arg0, %c0_i32 : i32, i32
  }
}

</mosaic_0001>

<llo_original>
// kernel: tpu_custom_call.1
$region0: #{tpu_custom_call.1}
  #allocation0 [shape = 'u32[]', space=smem, size = 0x4, offset = 0x4, fixed_abs, tag = 'smem constant byte address 0x4 - core index']
  #allocation1 [shape = 'u32[144,128]{1,0:T(1,128)}', space=vmem, size = 0x12000, scoped, tag = 'internal scratch']
  %s0 = inlined_call_operand.hbm [shape: f32[2,1024], index: 0, kind: input, shape index: {}]
  %s1 = inlined_call_operand.hbm [shape: f32[2,1024], index: 1, kind: output, shape index: {}]
  %s2 = sld [smem:[#allocation0]]
  $region18: #{tpu_custom_call.1} parent=0
    _
  %s4 = ssub.s32 1, %s2
  %s5 = scalar_select 0, %s4, %s2
  $region1: #{tpu_custom_call.1} parent=0
    #allocation2 [shape = 'u8[8192]{0}', space=vmem, size = 0x2000, scoped, tag = 'input window, operand 0, single buffered']
    #allocation3 [shape = 's32[1]{0}', space=sflag, size = 0x4, scoped, tag = 'scoped memory for tpu_custom_call.1']
    #allocation4 [shape = 's32[1]{0}', space=sflag, size = 0x4, scoped, tag = 'scoped memory for tpu_custom_call.1']
    #allocation5 [shape = 'u8[8192]{0}', space=vmem, size = 0x2000, scoped, tag = 'output window, operand 0, single buffered']
    %6 = vsyncpa [#allocation3], 0
    %7 = vsyncpa [#allocation4], 0
    // Predicated region
    $region2: #{tpu_custom_call.1} parent=1 // pred_check
      _
    $region3: #{tpu_custom_call.1} parent=1 // pred_check_branch
      %9 = sbr.rel (0) target = $region5
    $region4: #{tpu_custom_call.1} parent=1 // pred_region
      %s11 = ssub.s32 256, 256
      %12 = vsyncadd [#allocation3], %s11
      %s14 = sshll.u32 [#allocation2], 4
      %s15 = int_to_ptr.vmem [resolvable:$true] %s14
      %17 = dma.hbm_to_vmem [thread:$0]  %s0, 256, %s15, [#allocation3]
    $region5: #{tpu_custom_call.1} parent=1 // pred_fallthru
      _
    // Predicated region
    $region6: #{tpu_custom_call.1} parent=1 // pred_check
      _
    $region7: #{tpu_custom_call.1} parent=1 // pred_check_branch
      %19 = sbr.rel (0) target = $region9
    $region8: #{tpu_custom_call.1} parent=1 // pred_region
      %20 = dma.done [#allocation3], 256
    $region9: #{tpu_custom_call.1} parent=1 // pred_fallthru
      _
    %v21 = vld [vmem:[#allocation2] sm:$0xff]
    %v22 = vld [vmem:[#allocation2 + $0x8] sm:$0xff]
    %v23 = vmul.f32 %v21, %v21
    %v24 = vmul.f32 %v22, %v22
    %v25 = vmul.f32 %v23, 0.035677407
    %v26 = vmul.f32 %v24, 0.035677407
    %v27 = vadd.f32 %v25, 0.7978846
    %v28 = vadd.f32 %v26, 0.7978846
    %v29 = vmul.f32 %v21, %v27
    %v30 = vmul.f32 %v22, %v28
    %v31 = vmul.f32 %v21, 0.5
    %v32 = vmul.f32 %v22, 0.5
    %v33 = vtanh.pop %v29
    %v34 = vtanh.pop %v30
    %v35 = vadd.f32 %v33, 1.0
    %v36 = vadd.f32 %v34, 1.0
    %v37 = vmul.f32 %v31, %v35
    %v38 = vmul.f32 %v32, %v36
    %39 = vst [vmem:[#allocation5] sm:$0xff] %v37
    %40 = vst [vmem:[#allocation5 + $0x8] sm:$0xff] %v38
    // Predicated region
    $region10: #{tpu_custom_call.1} parent=1 // pred_check
      _
    $region11: #{tpu_custom_call.1} parent=1 // pred_check_branch
      %42 = sbr.rel (0) target = $region13
    $region12: #{tpu_custom_call.1} parent=1 // pred_region
      %s44 = ssub.s32 256, 256
      %45 = vsyncadd [#allocation4], %s44
      %s47 = sshll.u32 [#allocation5], 4
      %s48 = int_to_ptr.vmem [resolvable:$true] %s47
      %50 = dma.vmem_to_hbm [thread:$0]  %s48, 256, %s1, [#allocation4]
    $region13: #{tpu_custom_call.1} parent=1 // pred_fallthru
      _
    // Predicated region
    $region14: #{tpu_custom_call.1} parent=1 // pred_check
      _
    $region15: #{tpu_custom_call.1} parent=1 // pred_check_branch
      %52 = sbr.rel (0) target = $region17
    $region16: #{tpu_custom_call.1} parent=1 // pred_region
      %53 = dma.done [#allocation4], 256
    $region17: #{tpu_custom_call.1} parent=1 // pred_fallthru
      _
    %54 = vsyncpa [#allocation3], 1
    %55 = vsyncpa [#allocation4], 1

</llo_original>
